<compile_context>
chip_gen: v6e
topology: v6e:2x2x1
jax: 0.10.0
libtpu: 0.0.40
codegen_flags: <defaults>
</compile_context>

<pallas_src>
import functools

import jax
import jax.numpy as jnp
from jax.experimental import pallas as pl
from jax.experimental.pallas import tpu as pltpu


NCP = 128          # classifier lane padding: num_class (10) -> 128
NEG_INF = -1e30    # mask value for padded class logits


def _round_up(x, m):
    return ((x + m - 1) // m) * m


def _pick_row_tile(s):
    """M of the per-step stem matmul (rows of the packed im2col matrix)."""
    if s <= 4096:                      # tiny/moderate images: one step per image
        return s
    for t in range(2048, 7, -8):       # target M in [512, 2048], multiple of 8
        if s % t == 0:
            return t
    # TODO(synk): pad S and mask the tail tile for awkward row counts.
    return s


# -----------------------------------------------------------------------------
# Fused kernel: stem conv (single packed matmul) + bias + swish
#               + global-average-pool accumulation + fc + softmax
# -----------------------------------------------------------------------------
def _build_kernel(tm, cout, inv_s, sublane_acc):
    def kernel(x_ref, w_ref, b_ref, fcw_ref, fcb_ref, o_ref, acc_ref):
        # x_ref:   [tm, KDIM]    bf16  packed conv-window rows for this tile
        # w_ref:   [KDIM, COUT]  bf16  folded stem conv weight (one matrix)
        # b_ref:   [1, COUT]     f32   stem bias
        # fcw_ref: [COUT, NCP]   f32   classifier weight (padded classes = 0)
        # fcb_ref: [1, NCP]      f32   classifier bias (padded classes = -1e30)
        # o_ref:   [1, NCP]      f32   softmax probabilities
        # acc_ref: [8|1, COUT]   f32   pooled-sum accumulator (VMEM scratch)
        t = pl.program_id(1)

        @pl.when(t == 0)
        def _init():
            acc_ref[...] = jnp.zeros_like(acc_ref)

        # All four 3x3/s2 conv taps in ONE bf16 MXU matmul, f32 accumulation.
        y = jnp.dot(x_ref[...], w_ref[...], preferred_element_type=jnp.float32)
        y = y + b_ref[...]
        y = y * jax.nn.sigmoid(y)            # swish in f32; exp goes to the EUP

        if sublane_acc:
            # Per-sublane partial sums: pure VPU vreg adds in the hot loop; the
            # cross-sublane (XLU) collapse is deferred to the finalize branch.
            acc_ref[...] += jnp.sum(y.reshape(tm // 8, 8, cout), axis=0)
        else:
            acc_ref[...] += jnp.sum(y, axis=0, keepdims=True)

        @pl.when(t == pl.num_programs(1) - 1)
        def _finalize():
            pooled = jnp.sum(acc_ref[...], axis=0, keepdims=True) * inv_s  # [1,COUT]
            # Tiny classifier matmul in f32 (tighter softmax numerics).
            logits = jnp.dot(pooled, fcw_ref[...],
                             preferred_element_type=jnp.float32) + fcb_ref[...]
            m = jnp.max(logits, axis=1, keepdims=True)
            e = jnp.exp(logits - m)          # padded classes -> exp(-1e30) == 0
            o_ref[...] = e / jnp.sum(e, axis=1, keepdims=True)

    return kernel


# -----------------------------------------------------------------------------
# Forward pass
# -----------------------------------------------------------------------------
def pest_classifier_forward(x_nchw, params, *, num_class):
    """x_nchw: f32 [B, 3, H, W] (PyTorch layout). Returns [B, num_class] probs."""
    b, cin, h, w = x_nchw.shape
    assert h % 2 == 0 and w % 2 == 0, "even spatial dims expected"

    stem_w = params["stem_w_fold"]          # [KDIM, COUT]  bf16
    stem_b = params["stem_b"]               # [1, COUT]     f32
    fc_w = params["fc_w_pad"]               # [COUT, NCP]   f32
    fc_b = params["fc_b_pad"]               # [1, NCP]      f32
    kdim, cout = stem_w.shape
    ncp = fc_w.shape[1]

    ho, wo = h // 2, w // 2                 # conv(k=3, s=2, p=1) output size
    s = ho * wo                             # pooled elements per image
    tm = _pick_row_tile(s)
    t_steps = s // tm
    sublane_acc = (tm % 8 == 0)

    # Host-side "im2col-lite": cast to bf16 FIRST, then one pad + one transpose
    # packs the 2x2 space-to-depth conv window into the channel axis.  The
    # kernel input is a dense [B, S, KDIM] matrix -> dense DMAs, unmasked vlds,
    # and a single K=KDIM matmul per tile (vs. the old 16-channel minor dim).
    x = x_nchw.astype(jnp.bfloat16)
    x = jnp.pad(x, ((0, 0), (0, 0), (1, 1), (1, 1)))          # conv padding = 1
    s2d = x.reshape(b, cin, ho + 1, 2, wo + 1, 2)
    s2d = s2d.transpose(0, 2, 4, 3, 5, 1)                     # [B,ho+1,wo+1,2,2,cin]
    taps = [s2d[:, da:da + ho, db:db + wo] for da in (0, 1) for db in (0, 1)]
    xcol = jnp.stack(taps, axis=3).reshape(b, s, 16 * cin)    # (da,db,p,q,c) packed
    xcol = jnp.pad(xcol, ((0, 0), (0, 0), (0, kdim - 16 * cin)))

    kernel = _build_kernel(tm, cout, 1.0 / float(s), sublane_acc)
    acc_shape = (8, cout) if sublane_acc else (1, cout)

    grid_spec = pltpu.PrefetchScalarGridSpec(
        num_scalar_prefetch=0,
        grid=(b, t_steps),                  # batch parallel (v7x megacore), rows serial
        in_specs=[
            pl.BlockSpec((None, tm, kdim), lambda bi, ti: (bi, ti, 0)),
            pl.BlockSpec((kdim, cout), lambda bi, ti: (0, 0)),
            pl.BlockSpec((1, cout), lambda bi, ti: (0, 0)),
            pl.BlockSpec((cout, ncp), lambda bi, ti: (0, 0)),
            pl.BlockSpec((1, ncp), lambda bi, ti: (0, 0)),
        ],
        out_specs=pl.BlockSpec((None, 1, ncp), lambda bi, ti: (bi, 0, 0)),
        scratch_shapes=[pltpu.VMEM(acc_shape, jnp.float32)],
    )

    cost = pl.CostEstimate(
        flops=2 * b * s * kdim * cout + 2 * b * cout * ncp,
        transcendentals=b * s * cout + b * ncp,
        bytes_accessed=(xcol.size * 2 + stem_w.size * 2 + stem_b.size * 4
                        + fc_w.size * 4 + fc_b.size * 4 + b * ncp * 4),
    )

    # Blocks are row-tiled (<= ~256 KiB each, double-buffered), so 32 MiB of
    # scoped VMEM is ample headroom on v5e/v6e (128 MiB) and v7x (64 MiB).
    probs_pad = pl.pallas_call(
        kernel,
        out_shape=jax.ShapeDtypeStruct((b, 1, ncp), jnp.float32),
        grid_spec=grid_spec,
        compiler_params=pltpu.CompilerParams(
            dimension_semantics=("parallel", "arbitrary"),
            vmem_limit_bytes=32 * 1024 * 1024,
        ),
        cost_estimate=cost,
    )(xcol, stem_w, stem_b, fc_w, fc_b)

    return probs_pad[:, 0, :num_class]


# -----------------------------------------------------------------------------
# Parameters: raw (PyTorch-like) init + folding/padding for the kernel
# -----------------------------------------------------------------------------
def init_params(key, cin=3, stem_c=32, num_class=10):
    k1, k2, k3, k4 = jax.random.split(key, 4)
    return {
        "conv_w": jax.random.normal(k1, (3, 3, cin, stem_c), jnp.float32) * 0.1,  # HWIO
        "conv_b": jax.random.normal(k2, (stem_c,), jnp.float32) * 0.01,
        "fc_w": jax.random.normal(k3, (stem_c, num_class), jnp.float32) * 0.1,
        "fc_b": jax.random.normal(k4, (num_class,), jnp.float32) * 0.01,
    }


def prepare_params(raw, ncp=NCP):
    w = raw["conv_w"]                                  # HWIO [3, 3, cin, cout]
    kh, kw, cin, cout = w.shape
    kdim = _round_up(16 * cin, 8)                      # packed-window channels

    # Fold the 3x3/s2 conv into one [KDIM, COUT] matrix whose row order matches
    # the host-side packed channel order (da, db, p, q, c):
    #   W_fold[(da,db,p,q,c), co] = W[2*da + p, 2*db + q, c, co]   (0 if idx >= 3)
    w_pad = jnp.pad(w, ((0, 4 - kh), (0, 4 - kw), (0, 0), (0, 0)))   # [4,4,ci,co]
    w_fold = w_pad.reshape(2, 2, 2, 2, cin, cout)      # [da, p, db, q, c, co]
    w_fold = w_fold.transpose(0, 2, 1, 3, 4, 5)        # [da, db, p, q, c, co]
    w_fold = w_fold.reshape(16 * cin, cout)
    w_fold = jnp.pad(w_fold, ((0, kdim - 16 * cin), (0, 0))).astype(jnp.bfloat16)

    nc = raw["fc_w"].shape[1]
    fc_w = jnp.pad(raw["fc_w"], ((0, 0), (0, ncp - nc))).astype(jnp.float32)
    fc_b = jnp.full((1, ncp), NEG_INF, jnp.float32).at[0, :nc].set(raw["fc_b"])

    return {
        "stem_w_fold": w_fold,
        "stem_b": raw["conv_b"].reshape(1, cout).astype(jnp.float32),
        "fc_w_pad": fc_w,
        "fc_b_pad": fc_b,
    }


# -----------------------------------------------------------------------------
# Pure-JAX reference (f32, XLA conv) for correctness checking
# -----------------------------------------------------------------------------
def reference_forward(x_nchw, raw):
    x = jnp.transpose(x_nchw, (0, 2, 3, 1))
    y = jax.lax.conv_general_dilated(
        x, raw["conv_w"], window_strides=(2, 2), padding=((1, 1), (1, 1)),
        dimension_numbers=("NHWC", "HWIO", "NHWC"))
    y = y + raw["conv_b"]
    y = y * jax.nn.sigmoid(y)
    pooled = jnp.mean(y, axis=(1, 2))
    logits = pooled @ raw["fc_w"] + raw["fc_b"]
    return jax.nn.softmax(logits, axis=1)


if __name__ == "__main__":
    key = jax.random.PRNGKey(0)
    pkey, xkey = jax.random.split(key)

    num_class = 10
    raw = init_params(pkey, cin=3, stem_c=32, num_class=num_class)
    params = prepare_params(raw)

    # Small NCHW image batch consistent with forward(input_img); B=2 keeps both
    # v7x TensorCores busy via the parallel batch grid axis.
    x = jax.random.normal(xkey, (2, 3, 16, 16), jnp.float32)

    fwd = jax.jit(functools.partial(pest_classifier_forward, num_class=num_class))
    probs = jax.block_until_ready(fwd(x, params))

    ref = reference_forward(x, raw)

    assert probs.shape == (2, num_class)
    assert bool(jnp.all(jnp.isfinite(probs)))
    # rows sum to 1 (exact divide in the softmax finalize)
    assert bool(jnp.allclose(jnp.sum(probs, axis=1), 1.0, atol=1e-3))
    # matches the f32 XLA reference within bf16 tolerance
    assert bool(jnp.allclose(probs, ref, atol=5e-3))

    print("KERNEL_OK")
</pallas_src>

<mosaic_0001>
module attributes {stable_mosaic.version = 11 : i64} {
  func.func @kernel(%arg0: i32, %arg1: i32, %arg2: memref<1x64x48xbf16, #tpu.memory_space<vmem>>, %arg3: memref<48x32xbf16, #tpu.memory_space<vmem>>, %arg4: memref<1x32xf32, #tpu.memory_space<vmem>>, %arg5: memref<32x128xf32, #tpu.memory_space<vmem>>, %arg6: memref<1x128xf32, #tpu.memory_space<vmem>>, %arg7: memref<1x1x128xf32, #tpu.memory_space<vmem>>, %arg8: memref<8x32xf32, #tpu.memory_space<vmem>>) attributes {dimension_semantics = [#tpu.dimension_semantics<parallel>, #tpu.dimension_semantics<arbitrary>], iteration_bounds = array<i64: 2, 1>, scalar_prefetch = 0 : i64, scratch_operands = 1 : i64, tpu.core_type = #tpu.core_type<tc>, window_params = [{transform_indices = @transform_0, window_bounds = array<i64: 1, 64, 48>}, {pipeline_mode = #tpu.pipeline_mode<synchronous>, transform_indices = @transform_1, window_bounds = array<i64: 48, 32>}, {pipeline_mode = #tpu.pipeline_mode<synchronous>, transform_indices = @transform_2, window_bounds = array<i64: 1, 32>}, {pipeline_mode = #tpu.pipeline_mode<synchronous>, transform_indices = @transform_3, window_bounds = array<i64: 32, 128>}, {pipeline_mode = #tpu.pipeline_mode<synchronous>, transform_indices = @transform_4, window_bounds = array<i64: 1, 128>}, {transform_indices = @transform_5, window_bounds = array<i64: 1, 1, 128>}]} {
    %c0_i32 = arith.constant 0 : i32
    %0 = arith.cmpi eq, %arg1, %c0_i32 : i32
    %1 = arith.extui %0 : i1 to i32
    %c0_i32_0 = arith.constant 0 : i32
    %2 = arith.cmpi ne, %1, %c0_i32_0 : i32
    scf.if %2 {
      %cst_15 = arith.constant 0.000000e+00 : f32
      %24 = vector.broadcast %cst_15 : f32 to vector<8x32xf32>
      %c0_16 = arith.constant 0 : index
      %c0_17 = arith.constant 0 : index
      %25 = vector.load %arg8[%c0_16, %c0_17] : memref<8x32xf32, #tpu.memory_space<vmem>>, vector<8x32xf32>
      tpu.vector_store %arg8[%c0_16, %c0_17], %24 {strides = array<i32>} : memref<8x32xf32, #tpu.memory_space<vmem>>, vector<8x32xf32>,
    } else {
    }
    %c0 = arith.constant 0 : index
    %c0_1 = arith.constant 0 : index
    %c0_2 = arith.constant 0 : index
    %3 = vector.load %arg2[%c0, %c0_1, %c0_2] : memref<1x64x48xbf16, #tpu.memory_space<vmem>>, vector<1x64x48xbf16>
    %4 = vector.shape_cast %3 : vector<1x64x48xbf16> to vector<64x48xbf16>
    %c0_3 = arith.constant 0 : index
    %c0_4 = arith.constant 0 : index
    %5 = vector.load %arg3[%c0_3, %c0_4] : memref<48x32xbf16, #tpu.memory_space<vmem>>, vector<48x32xbf16>
    %cst = arith.constant dense<0.000000e+00> : vector<64x32xf32>
    %6 = tpu.matmul %4, %5, %cst {dimension_numbers = #tpu.dot_dimension_numbers<[1], [0], [0], [1], [0, 0, 1, 1], [], []>} : vector<64x48xbf16>, vector<48x32xbf16>, vector<64x32xf32> -> vector<64x32xf32>
    %c0_5 = arith.constant 0 : index
    %c0_6 = arith.constant 0 : index
    %7 = vector.load %arg4[%c0_5, %c0_6] : memref<1x32xf32, #tpu.memory_space<vmem>>, vector<1x32xf32>
    %8 = vector.broadcast %7 : vector<1x32xf32> to vector<64x32xf32>
    %9 = arith.addf %6, %8 : vector<64x32xf32>
    %10 = arith.negf %9 : vector<64x32xf32>
    %11 = math.exp %10 : vector<64x32xf32>
    %cst_7 = arith.constant 1.000000e+00 : f32
    %12 = vector.broadcast %cst_7 : f32 to vector<64x32xf32>
    %13 = arith.addf %12, %11 : vector<64x32xf32>
    %14 = arith.divf %12, %13 : vector<64x32xf32>
    %15 = arith.mulf %9, %14 : vector<64x32xf32>
    %c0_8 = arith.constant 0 : index
    %c0_9 = arith.constant 0 : index
    %16 = vector.load %arg8[%c0_8, %c0_9] : memref<8x32xf32, #tpu.memory_space<vmem>>, vector<8x32xf32>
    %17 = vector.shape_cast %15 : vector<64x32xf32> to vector<8x8x32xf32>
    %cst_10 = arith.constant dense<0.000000e+00> : vector<8x32xf32>
    %18 = vector.multi_reduction <add>, %17, %cst_10 [0] : vector<8x8x32xf32> to vector<8x32xf32>
    %19 = arith.addf %16, %18 : vector<8x32xf32>
    %c0_11 = arith.constant 0 : index
    %c0_12 = arith.constant 0 : index
    %20 = vector.load %arg8[%c0_11, %c0_12] : memref<8x32xf32, #tpu.memory_space<vmem>>, vector<8x32xf32>
    tpu.vector_store %arg8[%c0_11, %c0_12], %19 {strides = array<i32>} : memref<8x32xf32, #tpu.memory_space<vmem>>, vector<8x32xf32>,
    %c0_i32_13 = arith.constant 0 : i32
    %21 = arith.cmpi eq, %arg1, %c0_i32_13 : i32
    %22 = arith.extui %21 : i1 to i32
    %c0_i32_14 = arith.constant 0 : i32
    %23 = arith.cmpi ne, %22, %c0_i32_14 : i32
    scf.if %23 {
      %c0_15 = arith.constant 0 : index
      %c0_16 = arith.constant 0 : index
      %24 = vector.load %arg8[%c0_15, %c0_16] : memref<8x32xf32, #tpu.memory_space<vmem>>, vector<8x32xf32>
      %cst_17 = arith.constant dense<0.000000e+00> : vector<32xf32>
      %25 = vector.multi_reduction <add>, %24, %cst_17 [0] : vector<8x32xf32> to vector<32xf32>
      %26 = vector.shape_cast %25 : vector<32xf32> to vector<1x32xf32>
      %cst_18 = arith.constant 1.562500e-02 : f32
      %27 = vector.broadcast %cst_18 : f32 to vector<1x32xf32>
      %28 = arith.mulf %26, %27 : vector<1x32xf32>
      %c0_19 = arith.constant 0 : index
      %c0_20 = arith.constant 0 : index
      %29 = vector.load %arg5[%c0_19, %c0_20] : memref<32x128xf32, #tpu.memory_space<vmem>>, vector<32x128xf32>
      %cst_21 = arith.constant dense<0.000000e+00> : vector<1x128xf32>
      %30 = tpu.matmul %28, %29, %cst_21 {dimension_numbers = #tpu.dot_dimension_numbers<[1], [0], [0], [1], [0, 0, 1, 1], [], []>} : vector<1x32xf32>, vector<32x128xf32>, vector<1x128xf32> -> vector<1x128xf32>
      %c0_22 = arith.constant 0 : index
      %c0_23 = arith.constant 0 : index
      %31 = vector.load %arg6[%c0_22, %c0_23] : memref<1x128xf32, #tpu.memory_space<vmem>>, vector<1x128xf32>
      %32 = arith.addf %30, %31 : vector<1x128xf32>
      %cst_24 = arith.constant dense<0xFF800000> : vector<1xf32>
      %33 = vector.multi_reduction <maximumf>, %32, %cst_24 [1] : vector<1x128xf32> to vector<1xf32>
      %34 = vector.shape_cast %33 : vector<1xf32> to vector<1x1xf32>
      %35 = vector.broadcast %34 : vector<1x1xf32> to vector<1x128xf32>
      %36 = arith.subf %32, %35 : vector<1x128xf32>
      %37 = math.exp %36 : vector<1x128xf32>
      %cst_25 = arith.constant dense<0.000000e+00> : vector<1xf32>
      %38 = vector.multi_reduction <add>, %37, %cst_25 [1] : vector<1x128xf32> to vector<1xf32>
      %39 = vector.shape_cast %38 : vector<1xf32> to vector<1x1xf32>
      %40 = vector.broadcast %39 : vector<1x1xf32> to vector<1x128xf32>
      %41 = arith.divf %37, %40 : vector<1x128xf32>
      %c0_26 = arith.constant 0 : index
      %c0_27 = arith.constant 0 : index
      %c0_28 = arith.constant 0 : index
      %42 = vector.load %arg7[%c0_26, %c0_27, %c0_28] : memref<1x1x128xf32, #tpu.memory_space<vmem>>, vector<1x1x128xf32>
      %43 = vector.shape_cast %42 : vector<1x1x128xf32> to vector<1x128xf32>
      %44 = vector.shape_cast %41 : vector<1x128xf32> to vector<1x1x128xf32>
      tpu.vector_store %arg7[%c0_26, %c0_27, %c0_28], %44 {strides = array<i32>} : memref<1x1x128xf32, #tpu.memory_space<vmem>>, vector<1x1x128xf32>,
    } else {
    }
    return
  }
  func.func @transform_0(%arg0: i32, %arg1: i32) -> (i32, i32, i32) {
    %c0_i32 = arith.constant 0 : i32
    %c0_i32_0 = arith.constant 0 : i32
    return %arg0, %arg1, %c0_i32 : i32, i32, i32
  }
  func.func @transform_1(%arg0: i32, %arg1: i32) -> (i32, i32) {
    %c0_i32 = arith.constant 0 : i32
    %c0_i32_0 = arith.constant 0 : i32
    %c0_i32_1 = arith.constant 0 : i32
    return %c0_i32, %c0_i32_0 : i32, i32
  }
  func.func @transform_2(%arg0: i32, %arg1: i32) -> (i32, i32) {
    %c0_i32 = arith.constant 0 : i32
    %c0_i32_0 = arith.constant 0 : i32
    %c0_i32_1 = arith.constant 0 : i32
    return %c0_i32, %c0_i32_0 : i32, i32
  }
  func.func @transform_3(%arg0: i32, %arg1: i32) -> (i32, i32) {
    %c0_i32 = arith.constant 0 : i32
    %c0_i32_0 = arith.constant 0 : i32
    %c0_i32_1 = arith.constant 0 : i32
    return %c0_i32, %c0_i32_0 : i32, i32
  }
  func.func @transform_4(%arg0: i32, %arg1: i32) -> (i32, i32) {
    %c0_i32 = arith.constant 0 : i32
    %c0_i32_0 = arith.constant 0 : i32
    %c0_i32_1 = arith.constant 0 : i32
    return %c0_i32, %c0_i32_0 : i32, i32
  }
  func.func @transform_5(%arg0: i32, %arg1: i32) -> (i32, i32, i32) {
    %c0_i32 = arith.constant 0 : i32
    %c0_i32_0 = arith.constant 0 : i32
    %c0_i32_1 = arith.constant 0 : i32
    return %arg0, %c0_i32, %c0_i32_0 : i32, i32, i32
  }
}

</mosaic_0001>

<llo_original>
// kernel: pest_classifier_forward.1
$region0: #{pest_classifier_forward.1}
  #allocation0 [shape = 'u32[]', space=smem, size = 0x4, offset = 0x4, fixed_abs, tag = 'smem constant byte address 0x4 - core index']
  #allocation1 [shape = 'u32[144,128]{1,0:T(1,128)}', space=vmem, size = 0x12000, scoped, tag = 'internal scratch']
  #allocation2 [shape = 'f32[8,32]{1,0:T(8,128)}', space=vmem, size = 0x1000, scoped, tag = 'scratch operand']
  %s0 = inlined_call_operand.vmem [shape: bf16[2,64,48], index: 0, kind: input, shape index: {}]
  %s1 = inlined_call_operand.vmem [shape: bf16[48,32], index: 1, kind: input, shape index: {}]
  %s2 = inlined_call_operand.vmem [shape: f32[1,32], index: 2, kind: input, shape index: {}]
  %s3 = inlined_call_operand.vmem [shape: f32[32,128], index: 3, kind: input, shape index: {}]
  %s4 = inlined_call_operand.vmem [shape: f32[1,128], index: 4, kind: input, shape index: {}]
  %s5 = inlined_call_operand.hbm [shape: f32[2,1,128], index: 5, kind: output, shape index: {}]
  %s6 = sld [smem:[#allocation0]]
  $region61: #{pest_classifier_forward.1} parent=0
    _
  %s8 = ssub.s32 1, %s6
  %s9 = scalar_select 0, %s8, %s6
  $region1: #{pest_classifier_forward.1} parent=0
    #allocation3 [shape = 'u8[1024]{0}', space=vmem, size = 0x400, scoped, tag = 'output window, operand 0']
    #allocation4 [shape = 's32[2]{0}', space=sflag, size = 0x8, scoped, tag = 'scoped memory for pest_classifier_forward.1']
    %10 = vsyncpa [#allocation4], 0
    %s11 = scalar_lea.sflag [#allocation4], 1
    %12 = vsyncpa %s11, 0
    loop: start=0, step=1, limit=4
    $region2: #{pest_classifier_forward.1} parent=1 // loop_pre_header
      _
    $region3: #{pest_classifier_forward.1} parent=1 // loop_header
      %s14 = sphi 0, %s18
      %p15 = scmp.ge.s32.totalorder %s14, 4
      %s21 = sphi 0, %s33
      %s22 = sphi 0, %s29
      %s23 = sphi 0, %s21
      %s24 = sphi 0, %s22
      %s25 = sphi 0, %s23
      %s26 = sphi 0, %s24
      %s38 = sphi 0, %s40
      %s41 = sphi 0, %s38
      %s42 = sphi 0, %s41
      %s58 = sphi 0, %s42
      %s62 = sphi 0, %s62
      %s64 = sphi 0, %s62
      %s65 = sphi 0, %s64
      %s79 = sphi 0, %s65
      %s83 = sphi 0, %s83
      %s85 = sphi 0, %s83
      %s86 = sphi 0, %s85
      %s100 = sphi 0, %s86
      %s104 = sphi 0, %s104
      %s106 = sphi 0, %s104
      %s107 = sphi 0, %s106
      %s121 = sphi 0, %s107
      %s125 = sphi 0, %s125
      %s127 = sphi 0, %s125
      %s128 = sphi 0, %s127
      %s142 = sphi 0, %s128
      %s148 = sphi 0, %s150
      %s151 = sphi 0, %s148
      %s152 = sphi 0, %s151
      %s168 = sphi 0, %s152
    $region4: #{pest_classifier_forward.1} parent=1 // loop_header_branch
      %17 = sbr.rel (%p15) target = $region8
    $region5: #{pest_classifier_forward.1} parent=1 // loop_body
      %s19 = ssub.s32 %s14, 1
      %s20 = ssub.s32 %s14, 2
      %s27 = sadd.s32 1, %s22
      %p28 = scmp.ge.s32.totalorder %s27, 1
      %s29 = scalar_select %p28, 0, %s27
      %s30 = sadd.s32 1, %s21
      %s31 = scalar_select %p28, %s30, %s21
      %p32 = scmp.ge.s32.totalorder %s31, 2
      %s33 = scalar_select %p32, 0, %s31
      %s34 = ssub.s32 %s21, %s33
      %s35 = ssub.s32 %s22, %s29
      %s36 = sor.u32 %s34, %s35
      %p37 = scmp.eq.s32.totalorder %s36, 0
      %s39 = sadd.s32 %s38, 1
      %s40 = scalar_select %p37, %s38, %s39
      %p43 = pneg %p37
      %p44 = scmp.eq.s32.totalorder %s14, 1
      %p45 = por %p43, %p44
      %p46 = scmp.ne.s32.totalorder %s38, %s41
      %p47 = scmp.eq.s32.totalorder %s14, 0
      %p48 = por %p46, %p47
      %p49 = scmp.ne.s32.totalorder %s38, %s41
      %p50 = scmp.eq.s32.totalorder %s19, 1
      %p51 = por %p49, %p50
      %p52 = scmp.ne.s32.totalorder %s41, %s42
      %p53 = scmp.eq.s32.totalorder %s19, 0
      %p54 = por %p52, %p53
      %p55 = scmp.ne.s32.totalorder %s41, %s42
      %p56 = scmp.eq.s32.totalorder %s20, 1
      %p57 = por %p55, %p56
      %p59 = scmp.ne.s32.totalorder %s42, %s58
      %p60 = scmp.eq.s32.totalorder %s20, 0
      %p61 = por %p59, %p60
      %s63 = sadd.s32 %s62, 1
      %p66 = scmp.eq.s32.totalorder %s14, 1
      %p67 = scmp.ne.s32.totalorder %s62, %s64
      %p68 = scmp.eq.s32.totalorder %s14, 0
      %p69 = por %p67, %p68
      %p70 = scmp.ne.s32.totalorder %s62, %s64
      %p71 = scmp.eq.s32.totalorder %s19, 1
      %p72 = por %p70, %p71
      %p73 = scmp.ne.s32.totalorder %s64, %s65
      %p74 = scmp.eq.s32.totalorder %s19, 0
      %p75 = por %p73, %p74
      %p76 = scmp.ne.s32.totalorder %s64, %s65
      %p77 = scmp.eq.s32.totalorder %s20, 1
      %p78 = por %p76, %p77
      %p80 = scmp.ne.s32.totalorder %s65, %s79
      %p81 = scmp.eq.s32.totalorder %s20, 0
      %p82 = por %p80, %p81
      %s84 = sadd.s32 %s83, 1
      %p87 = scmp.eq.s32.totalorder %s14, 1
      %p88 = scmp.ne.s32.totalorder %s83, %s85
      %p89 = scmp.eq.s32.totalorder %s14, 0
      %p90 = por %p88, %p89
      %p91 = scmp.ne.s32.totalorder %s83, %s85
      %p92 = scmp.eq.s32.totalorder %s19, 1
      %p93 = por %p91, %p92
      %p94 = scmp.ne.s32.totalorder %s85, %s86
      %p95 = scmp.eq.s32.totalorder %s19, 0
      %p96 = por %p94, %p95
      %p97 = scmp.ne.s32.totalorder %s85, %s86
      %p98 = scmp.eq.s32.totalorder %s20, 1
      %p99 = por %p97, %p98
      %p101 = scmp.ne.s32.totalorder %s86, %s100
      %p102 = scmp.eq.s32.totalorder %s20, 0
      %p103 = por %p101, %p102
      %s105 = sadd.s32 %s104, 1
      %p108 = scmp.eq.s32.totalorder %s14, 1
      %p109 = scmp.ne.s32.totalorder %s104, %s106
      %p110 = scmp.eq.s32.totalorder %s14, 0
      %p111 = por %p109, %p110
      %p112 = scmp.ne.s32.totalorder %s104, %s106
      %p113 = scmp.eq.s32.totalorder %s19, 1
      %p114 = por %p112, %p113
      %p115 = scmp.ne.s32.totalorder %s106, %s107
      %p116 = scmp.eq.s32.totalorder %s19, 0
      %p117 = por %p115, %p116
      %p118 = scmp.ne.s32.totalorder %s106, %s107
      %p119 = scmp.eq.s32.totalorder %s20, 1
      %p120 = por %p118, %p119
      %p122 = scmp.ne.s32.totalorder %s107, %s121
      %p123 = scmp.eq.s32.totalorder %s20, 0
      %p124 = por %p122, %p123
      %s126 = sadd.s32 %s125, 1
      %p129 = scmp.eq.s32.totalorder %s14, 1
      %p130 = scmp.ne.s32.totalorder %s125, %s127
      %p131 = scmp.eq.s32.totalorder %s14, 0
      %p132 = por %p130, %p131
      %p133 = scmp.ne.s32.totalorder %s125, %s127
      %p134 = scmp.eq.s32.totalorder %s19, 1
      %p135 = por %p133, %p134
      %p136 = scmp.ne.s32.totalorder %s127, %s128
      %p137 = scmp.eq.s32.totalorder %s19, 0
      %p138 = por %p136, %p137
      %p139 = scmp.ne.s32.totalorder %s127, %s128
      %p140 = scmp.eq.s32.totalorder %s20, 1
      %p141 = por %p139, %p140
      %p143 = scmp.ne.s32.totalorder %s128, %s142
      %p144 = scmp.eq.s32.totalorder %s20, 0
      %p145 = por %p143, %p144
      %s146 = ssub.s32 %s21, %s33
      %p147 = scmp.eq.s32.totalorder %s146, 0
      %s149 = sadd.s32 %s148, 1
      %s150 = scalar_select %p147, %s148, %s149
      %p153 = pneg %p147
      %p154 = scmp.eq.s32.totalorder %s14, 1
      %p155 = por %p153, %p154
      %p156 = scmp.ne.s32.totalorder %s148, %s151
      %p157 = scmp.eq.s32.totalorder %s14, 0
      %p158 = por %p156, %p157
      %p159 = scmp.ne.s32.totalorder %s148, %s151
      %p160 = scmp.eq.s32.totalorder %s19, 1
      %p161 = por %p159, %p160
      %p162 = scmp.ne.s32.totalorder %s151, %s152
      %p163 = scmp.eq.s32.totalorder %s19, 0
      %p164 = por %p162, %p163
      %p165 = scmp.ne.s32.totalorder %s151, %s152
      %p166 = scmp.eq.s32.totalorder %s20, 1
      %p167 = por %p165, %p166
      %p169 = scmp.ne.s32.totalorder %s152, %s168
      %p170 = scmp.eq.s32.totalorder %s20, 0
      %p171 = por %p169, %p170
      %p172 = scmp.le.s32.totalorder 1, %s14
      %p173 = scmp.lt.s32.totalorder %s14, 3
      %p174 = pnand %p172, %p173
      %p175 = pneg %p174
      // Predicated region
      $region9: #{pest_classifier_forward.1} parent=5 // pred_check
        _
      $region10: #{pest_classifier_forward.1} parent=5 // pred_check_branch
        %177 = sbr.rel (%p174) target = $region12
      $region11: #{pest_classifier_forward.1} parent=5 // pred_region
        %s178 = ssub.s32 %s14, 1
        // Predicated region
        $region13: #{pest_classifier_forward.1} parent=11 // pred_check
          %p179 = pneg %p75
        $region14: #{pest_classifier_forward.1} parent=11 // pred_check_branch
          %181 = sbr.rel (%p179) target = $region16
        $region15: #{pest_classifier_forward.1} parent=11 // pred_region
          _
        $region16: #{pest_classifier_forward.1} parent=11 // pred_fallthru
          _
        // Predicated region
        $region17: #{pest_classifier_forward.1} parent=11 // pred_check
          %p182 = pneg %p96
        $region18: #{pest_classifier_forward.1} parent=11 // pred_check_branch
          %184 = sbr.rel (%p182) target = $region20
        $region19: #{pest_classifier_forward.1} parent=11 // pred_region
          _
        $region20: #{pest_classifier_forward.1} parent=11 // pred_fallthru
          _
        // Predicated region
        $region21: #{pest_classifier_forward.1} parent=11 // pred_check
          %p185 = pneg %p117
        $region22: #{pest_classifier_forward.1} parent=11 // pred_check_branch
          %187 = sbr.rel (%p185) target = $region24
        $region23: #{pest_classifier_forward.1} parent=11 // pred_region
          _
        $region24: #{pest_classifier_forward.1} parent=11 // pred_fallthru
          _
        // Predicated region
        $region25: #{pest_classifier_forward.1} parent=11 // pred_check
          %p188 = pneg %p138
        $region26: #{pest_classifier_forward.1} parent=11 // pred_check_branch
          %190 = sbr.rel (%p188) target = $region28
        $region27: #{pest_classifier_forward.1} parent=11 // pred_region
          _
        $region28: #{pest_classifier_forward.1} parent=11 // pred_fallthru
          _
      $region12: #{pest_classifier_forward.1} parent=5 // pred_fallthru
        _
      %p191 = scmp.lt.s32.totalorder %s14, 2
      // Predicated region
      $region29: #{pest_classifier_forward.1} parent=5 // pred_check
        %p192 = pneg %p191
      $region30: #{pest_classifier_forward.1} parent=5 // pred_check_branch
        %194 = sbr.rel (%p192) target = $region32
      $region31: #{pest_classifier_forward.1} parent=5 // pred_region
        // Predicated region
        $region33: #{pest_classifier_forward.1} parent=31 // pred_check
          %p195 = pneg %p48
        $region34: #{pest_classifier_forward.1} parent=31 // pred_check_branch
          %197 = sbr.rel (%p195) target = $region36
        $region35: #{pest_classifier_forward.1} parent=31 // pred_region
          %s198 = smul.u32 8, %s22
          %p199 = scmp.lt.s32.totalorder %s21, 1
          %s200 = scalar_select %p199, %s21, 1
          %p201 = scmp.lt.s32.totalorder %s198, 7
          %s202 = scalar_select %p201, %s198, 7
          %s203 = smul.addr %s200, 8
          %s204 = sadd.s32 %s202, %s203
          %s205 = smul.addr %s204, 4
          %s206 = scalar_lea.vmem %s0, %s205
          %s207 = smul.u32 8, %s22
        $region36: #{pest_classifier_forward.1} parent=31 // pred_fallthru
          _
      $region32: #{pest_classifier_forward.1} parent=5 // pred_fallthru
        _
      %p208 = scmp.le.s32.totalorder 1, %s14
      %p209 = scmp.lt.s32.totalorder %s14, 3
      %p210 = pnand %p208, %p209
      %p211 = pneg %p210
      // Predicated region
      $region37: #{pest_classifier_forward.1} parent=5 // pred_check
        _
      $region38: #{pest_classifier_forward.1} parent=5 // pred_check_branch
        %213 = sbr.rel (%p210) target = $region40
      $region39: #{pest_classifier_forward.1} parent=5 // pred_region
        %s214 = ssub.s32 %s14, 1
        %s215 = smul.u32 8, %s24
        %p216 = scmp.lt.s32.totalorder %s23, 1
        %s217 = scalar_select %p216, %s23, 1
        %p218 = scmp.lt.s32.totalorder %s215, 7
        %s219 = scalar_select %p218, %s215, 7
        %s220 = smul.addr %s217, 8
        %s221 = sadd.s32 %s219, %s220
        %s222 = smul.addr %s221, 4
        %s223 = scalar_lea.vmem %s0, %s222
        %p224 = pneg %p54
        %p225 = pneg %p51
        %p226 = pneg %p75
        %p227 = pneg %p72
        %p228 = pneg %p96
        %p229 = pneg %p93
        %p230 = pneg %p117
        %p231 = pneg %p114
        %p232 = pneg %p138
        %p233 = pneg %p135
        %p234 = pneg %p164
        %p235 = pneg %p161
        %s236 = sand.u32 %s151, 1
        %s237 = scalar_lea.sflag [#allocation4], %s236
        %s238 = sand.u32 %s151, 1
        %s239 = scalar_lea.vmem [#allocation3], %s238
        %s240 = smul.u32 8, %s24
        %p241 = scmp.lt.s32.totalorder %s23, 1
        %s242 = scalar_select %p241, %s23, 1
        %p243 = scmp.lt.s32.totalorder %s240, 7
        %s244 = scalar_select %p243, %s240, 7
        %s245 = smul.addr %s242, 8
        %s246 = sadd.s32 %s244, %s245
        %s247 = smul.addr %s246, 4
        %s248 = scalar_lea.vmem %s0, %s247
        %s249 = smul.u32 8, %s24
        %p251 = scmp.eq.s32.totalorder %s24, 0
        // Predicated region
        $region41: #{pest_classifier_forward.1} parent=39 // pred_check
          %p252 = pneg %p251
        $region42: #{pest_classifier_forward.1} parent=39 // pred_check_branch
          %254 = sbr.rel (%p252) target = $region44
        $region43: #{pest_classifier_forward.1} parent=39 // pred_region
          %vm255 = vcmask 261120
          %256 = vst.msk [vmem:[#allocation2] sm:$0xff] %vm255, 0.0
        $region44: #{pest_classifier_forward.1} parent=39 // pred_fallthru
          _
        %v257 = vld [vmem:[%s248] sm:$0xf]
        %v258 = vld [vmem:[%s248 + $0x4] sm:$0xf]
        %v259 = vld [vmem:[%s248 + $0x8] sm:$0xf]
        %v260 = vld [vmem:[%s248 + $0xc] sm:$0xf]
        %v261 = vld [vmem:[%s248 + $0x10] sm:$0xf]
        %v262 = vld [vmem:[%s248 + $0x14] sm:$0xf]
        %v263 = vld [vmem:[%s248 + $0x18] sm:$0xf]
        %v264 = vld [vmem:[%s248 + $0x1c] sm:$0xf]
        %v265 = vld [vmem:[%s1] sm:$0xf]
        %v266 = vld [vmem:[%s1 + $0x4] sm:$0xf]
        %v267 = vld [vmem:[%s1 + $0x8] sm:$0xf]
        %v268 = vld [vmem:[%s1 + $0xc] sm:$0xf]
        %v269 = vld [vmem:[%s1 + $0x10] sm:$0xf]
        %v270 = vld [vmem:[%s1 + $0x14] sm:$0xf]
        %v271 = vld [vmem:[%s2] sm:$0x1]
        %v273 = vlaneseq
        %v274 = vshrl.u32 %v273, 7
        %v275 = vsub.s32 0, %v274
        %v276 = vrot.slane %v271, %v275
        %v286 = vunpack.c.l.b16 %v257
        %v287 = vunpack.c.l.b16 %v258
        %v288 = vunpack.c.l.b16 %v259
        %v289 = vunpack.c.l.b16 %v260
        %v290 = vunpack.c.l.b16 %v261
        %v291 = vunpack.c.l.b16 %v262
        %v292 = vunpack.c.l.b16 %v263
        %v293 = vunpack.c.l.b16 %v264
        %v294 = vpack.c.b16 %v287, %v286
        %v295 = vpack.c.b16 %v289, %v288
        %v296 = vpack.c.b16 %v291, %v290
        %v297 = vpack.c.b16 %v293, %v292
        %v304 = vunpack.c.l.b16 %v265
        %v305 = vunpack.c.l.b16 %v266
        %v306 = vunpack.c.l.b16 %v267
        %v307 = vunpack.c.l.b16 %v268
        %v308 = vunpack.c.l.b16 %v269
        %v309 = vunpack.c.l.b16 %v270
        %v310 = vpack.c.b16 %v305, %v304
        %v311 = vpack.c.b16 %v307, %v306
        %v312 = vpack.c.b16 %v309, %v308
        %vm316 = vcmask 392192
        %v318 = vsel %vm316, %v294, 0
        %v321 = vsel %vm316, %v295, 0
        %v324 = vsel %vm316, %v296, 0
        %v327 = vsel %vm316, %v297, 0
        %329 = vmatprep.subr.bf16.mxu0 0
        %330 = vmatpush1.bf16.msra.mxu0 0
        %331 = vmatprep.subr.bf16.mxu0 0
        %332 = vmatpush1.bf16.msra.mxu0 0
        %333 = vmatprep.subr.bf16.mxu0 0
        %334 = vmatpush1.bf16.msra.mxu0 0
        %335 = vmatprep.subr.bf16.mxu0 0
        %336 = vmatpush1.bf16.msra.mxu0 0
        %337 = vmatprep.subr.bf16.mxu0 0
        %338 = vmatpush1.bf16.msra.mxu0 0
        %339 = vmatprep.subr.bf16.mxu0 0
        %340 = vmatpush1.bf16.msra.mxu0 %v312
        %341 = vmatprep.subr.bf16.mxu0 0
        %342 = vmatpush1.bf16.msra.mxu0 %v311
        %343 = vmatprep.subr.bf16.mxu0 0
        %344 = vmatpush1.bf16.msra.mxu0 %v310
        %345 = vmatprep.subr.bf16.mxu0 0
        %346 = vmatpush2.bf16.msra.mxu0 0
        %347 = vmatprep.subr.bf16.mxu0 0
        %348 = vmatpush2.bf16.msra.mxu0 0
        %349 = vmatprep.subr.bf16.mxu0 0
        %350 = vmatpush2.bf16.msra.mxu0 0
        %351 = vmatprep.subr.bf16.mxu0 0
        %352 = vmatpush2.bf16.msra.mxu0 0
        %353 = vmatprep.subr.bf16.mxu0 0
        %354 = vmatpush2.bf16.msra.mxu0 0
        %355 = vmatprep.subr.bf16.mxu0 0
        %356 = vmatpush2.bf16.msra.mxu0 0
        %357 = vmatprep.subr.bf16.mxu0 0
        %358 = vmatpush2.bf16.msra.mxu0 0
        %359 = vmatprep.subr.bf16.mxu0 0
        %360 = vmatpush2.bf16.msra.mxu0 0
        %361 = vmatprep.mubr.bf16.mxu0 0
        %362 = vmatmul.mubr.bf16.gmra.mxu0 %v318
        %v363 = vpop.f32.mrf.mxu0
        %v364 = vadd.f32 %v276, %v363
        %v365 = vpop.f32.mrf.mxu0
        %v366 = vpop.f32.mrf.mxu0
        %v367 = vadd.f32 %v276, %v366
        %v368 = vpop.f32.mrf.mxu0
        %369 = vmatprep.mubr.bf16.mxu0 0
        %370 = vmatmul.mubr.bf16.gmra.mxu0 %v321
        %v371 = vpop.f32.mrf.mxu0
        %v372 = vadd.f32 %v276, %v371
        %v373 = vpop.f32.mrf.mxu0
        %v374 = vpop.f32.mrf.mxu0
        %v375 = vadd.f32 %v276, %v374
        %v376 = vpop.f32.mrf.mxu0
        %377 = vmatprep.mubr.bf16.mxu0 0
        %378 = vmatmul.mubr.bf16.gmra.mxu0 %v324
        %v379 = vpop.f32.mrf.mxu0
        %v380 = vadd.f32 %v276, %v379
        %v381 = vpop.f32.mrf.mxu0
        %v382 = vpop.f32.mrf.mxu0
        %v383 = vadd.f32 %v276, %v382
        %v384 = vpop.f32.mrf.mxu0
        %385 = vmatprep.mubr.bf16.mxu0 0
        %386 = vmatmul.mubr.bf16.gmra.mxu0 %v327
        %v387 = vpop.f32.mrf.mxu0
        %v388 = vadd.f32 %v276, %v387
        %v389 = vpop.f32.mrf.mxu0
        %v390 = vpop.f32.mrf.mxu0
        %v391 = vadd.f32 %v276, %v390
        %v392 = vpop.f32.mrf.mxu0
        %393 = vdwg.mxu0
        %v394 = vxor.u32 %v364, 2147483648
        %v395 = vxor.u32 %v367, 2147483648
        %v396 = vxor.u32 %v372, 2147483648
        %v397 = vxor.u32 %v375, 2147483648
        %v398 = vxor.u32 %v380, 2147483648
        %v399 = vxor.u32 %v383, 2147483648
        %v400 = vxor.u32 %v388, 2147483648
        %v401 = vxor.u32 %v391, 2147483648
        %v402 = vmul.f32 %v394, 1.442695
        %v403 = vpow.pop %v402
        %v404 = vmul.f32 %v395, 1.442695
        %v405 = vpow.pop %v404
        %v406 = vmul.f32 %v396, 1.442695
        %v407 = vpow.pop %v406
        %v408 = vmul.f32 %v397, 1.442695
        %v409 = vpow.pop %v408
        %v410 = vmul.f32 %v398, 1.442695
        %v411 = vpow.pop %v410
        %v412 = vmul.f32 %v399, 1.442695
        %v413 = vpow.pop %v412
        %v414 = vmul.f32 %v400, 1.442695
        %v415 = vpow.pop %v414
        %v416 = vmul.f32 %v401, 1.442695
        %v417 = vpow.pop %v416
        %v418 = vadd.f32 %v403, 1.0
        %v419 = vadd.f32 %v405, 1.0
        %v420 = vadd.f32 %v407, 1.0
        %v421 = vadd.f32 %v409, 1.0
        %v422 = vadd.f32 %v411, 1.0
        %v423 = vadd.f32 %v413, 1.0
        %v424 = vadd.f32 %v415, 1.0
        %v425 = vadd.f32 %v417, 1.0
        %v426 = vrcp.pop %v418
        %v427 = vmul.f32 1.0, %v426
        %v428 = vrcp.pop %v419
        %v429 = vmul.f32 1.0, %v428
        %v430 = vrcp.pop %v420
        %v431 = vmul.f32 1.0, %v430
        %v432 = vrcp.pop %v421
        %v433 = vmul.f32 1.0, %v432
        %v434 = vrcp.pop %v422
        %v435 = vmul.f32 1.0, %v434
        %v436 = vrcp.pop %v423
        %v437 = vmul.f32 1.0, %v436
        %v438 = vrcp.pop %v424
        %v439 = vmul.f32 1.0, %v438
        %v440 = vrcp.pop %v425
        %v441 = vmul.f32 1.0, %v440
        %v442 = vmul.f32 %v364, %v427
        %v443 = vmul.f32 %v367, %v429
        %v444 = vmul.f32 %v372, %v431
        %v445 = vmul.f32 %v375, %v433
        %v446 = vmul.f32 %v380, %v435
        %v447 = vmul.f32 %v383, %v437
        %v448 = vmul.f32 %v388, %v439
        %v449 = vmul.f32 %v391, %v441
        %v450 = vld [vmem:[#allocation2] sm:$0xff]
        %vm451 = vcmask 261120
        %v452 = vsel %vm451, %v442, 0.0
        %v453 = vsel %vm451, %v443, 0.0
        %v454 = vadd.f32 %v452, %v453
        %v455 = vsel %vm451, %v444, 0.0
        %v456 = vadd.f32 %v454, %v455
        %v457 = vsel %vm451, %v445, 0.0
        %v458 = vadd.f32 %v456, %v457
        %v459 = vsel %vm451, %v446, 0.0
        %v460 = vadd.f32 %v458, %v459
        %v461 = vsel %vm451, %v447, 0.0
        %v462 = vadd.f32 %v460, %v461
        %v463 = vsel %vm451, %v448, 0.0
        %v464 = vadd.f32 %v462, %v463
        %v465 = vsel %vm451, %v449, 0.0
        %v466 = vadd.f32 %v464, %v465
        %v467 = vadd.f32 %v450, %v466
        %468 = vst.msk [vmem:[#allocation2] sm:$0xff] %vm451, %v467
        // Predicated region
        $region45: #{pest_classifier_forward.1} parent=39 // pred_check
          %p469 = pneg %p251
        $region46: #{pest_classifier_forward.1} parent=39 // pred_check_branch
          %471 = sbr.rel (%p469) target = $region48
        $region47: #{pest_classifier_forward.1} parent=39 // pred_region
          %v472 = vld [vmem:[#allocation2] sm:$0xff]
          %v473 = vsel %vm451, %v472, 0.0
          %v474 = vrot.slane %v473, 4
          %v475 = vadd.f32 %v473, %v474
          %v476 = vrot.slane %v475, 2
          %v477 = vadd.f32 %v475, %v476
          %v478 = vrot.slane %v477, 1
          %v479 = vadd.f32 %v477, %v478
          %v480 = vmul.f32 %v479, 0.015625
          %v481 = vld [vmem:[%s3] sm:$0xff]
          %v482 = vld [vmem:[%s3 + $0x8] sm:$0xff]
          %v483 = vld [vmem:[%s3 + $0x10] sm:$0xff]
          %v484 = vld [vmem:[%s3 + $0x18] sm:$0xff]
          %v485 = vld [vmem:[%s4] sm:$0x1]
          %v487 = vsel %vm451, %v480, 0
          %489 = vmatprep.subr.mxu0 0.0
          %490 = vmatpush1.msra.mxu0 0.0
          %491 = vmatprep.subr.mxu0 0.0
          %492 = vmatpush1.msra.mxu0 0.0
          %493 = vmatprep.subr.mxu0 0.0
          %494 = vmatpush1.msra.mxu0 0.0
          %495 = vmatprep.subr.mxu0 0.0
          %496 = vmatpush1.msra.mxu0 0.0
          %497 = vmatprep.subr.mxu0 0.0
          %498 = vmatpush1.msra.mxu0 0.0
          %499 = vmatprep.subr.mxu0 0.0
          %500 = vmatpush1.msra.mxu0 0.0
          %501 = vmatprep.subr.mxu0 0.0
          %502 = vmatpush1.msra.mxu0 0.0
          %503 = vmatprep.subr.mxu0 0.0
          %504 = vmatpush1.msra.mxu0 0.0
          %505 = vmatprep.subr.mxu0 0.0
          %506 = vmatpush1.msra.mxu0 0.0
          %507 = vmatprep.subr.mxu0 0.0
          %508 = vmatpush1.msra.mxu0 0.0
          %509 = vmatprep.subr.mxu0 0.0
          %510 = vmatpush1.msra.mxu0 0.0
          %511 = vmatprep.subr.mxu0 0.0
          %512 = vmatpush1.msra.mxu0 0.0
          %513 = vmatprep.subr.mxu0 0.0
          %514 = vmatpush1.msra.mxu0 %v484
          %515 = vmatprep.subr.mxu0 0.0
          %516 = vmatpush1.msra.mxu0 %v483
          %517 = vmatprep.subr.mxu0 0.0
          %518 = vmatpush1.msra.mxu0 %v482
          %519 = vmatprep.subr.mxu0 0.0
          %520 = vmatpush1.msra.mxu0 %v481
          %521 = vmatprep.subr.mxu0 0.0
          %522 = vmatpush2.msra.mxu0 0.0
          %523 = vmatprep.subr.mxu0 0.0
          %524 = vmatpush2.msra.mxu0 0.0
          %525 = vmatprep.subr.mxu0 0.0
          %526 = vmatpush2.msra.mxu0 0.0
          %527 = vmatprep.subr.mxu0 0.0
          %528 = vmatpush2.msra.mxu0 0.0
          %529 = vmatprep.subr.mxu0 0.0
          %530 = vmatpush2.msra.mxu0 0.0
          %531 = vmatprep.subr.mxu0 0.0
          %532 = vmatpush2.msra.mxu0 0.0
          %533 = vmatprep.subr.mxu0 0.0
          %534 = vmatpush2.msra.mxu0 0.0
          %535 = vmatprep.subr.mxu0 0.0
          %536 = vmatpush2.msra.mxu0 0.0
          %537 = vmatprep.subr.mxu0 0.0
          %538 = vmatpush2.msra.mxu0 0.0
          %539 = vmatprep.subr.mxu0 0.0
          %540 = vmatpush2.msra.mxu0 0.0
          %541 = vmatprep.subr.mxu0 0.0
          %542 = vmatpush2.msra.mxu0 0.0
          %543 = vmatprep.subr.mxu0 0.0
          %544 = vmatpush2.msra.mxu0 0.0
          %545 = vmatprep.subr.mxu0 0.0
          %546 = vmatpush2.msra.mxu0 0.0
          %547 = vmatprep.subr.mxu0 0.0
          %548 = vmatpush2.msra.mxu0 0.0
          %549 = vmatprep.subr.mxu0 0.0
          %550 = vmatpush2.msra.mxu0 0.0
          %551 = vmatprep.subr.mxu0 0.0
          %552 = vmatpush2.msra.mxu0 0.0
          %553 = vmatprep.mubr.f32.mxu0 0.0
          %554 = vmatmul.mubr.f32.gmra.mxu0 %v487
          %v555 = vpop.f32.mrf.mxu0
          %v556 = vadd.f32 %v485, %v555
          %v557 = vpop.f32.mrf.mxu0
          %558 = vdwg.mxu0
          %vm559 = vcmask 1040384
          %v560 = vsel %vm559, %v556, -inf
          %561 = vmax.xlane.f32.xlu0 %v560
          %v562 = vpop.xlane.xlu0 %561
          %v563 = vsub.f32 %v556, %v562
          %v564 = vmul.f32 %v563, 1.442695
          %v565 = vpow.pop %v564
          %v566 = vsel %vm559, %v565, 0.0
          %567 = vadd.xlane.f32.xlu0 %v566
          %v568 = vpop.xlane.xlu0 %567
          %v569 = vrcp.pop %v568
          %v570 = vmul.f32 %v565, %v569
          %571 = vst [vmem:[%s239] sm:$0x1] %v570
        $region48: #{pest_classifier_forward.1} parent=39 // pred_fallthru
          _
        %s572 = sand.u32 %s151, 1
        %s573 = scalar_lea.sflag [#allocation4], %s572
        %s574 = sand.u32 %s151, 1
        %s575 = scalar_lea.vmem [#allocation3], %s574
        // Predicated region
        $region49: #{pest_classifier_forward.1} parent=39 // pred_check
          %p576 = pneg %p161
        $region50: #{pest_classifier_forward.1} parent=39 // pred_check_branch
          %578 = sbr.rel (%p576) target = $region52
        $region51: #{pest_classifier_forward.1} parent=39 // pred_region
          %s580 = ssub.s32 16, 16
          %581 = vsyncadd %s573, %s580
          %s582 = smul.addr %s23, 16
          %s583 = scalar_lea.hbm %s5, %s582
          %s585 = sshll.u32 %s575, 4
          %s586 = int_to_ptr.vmem [resolvable:$true] %s585
          %588 = dma.vmem_to_hbm [thread:$0]  %s586, 16, %s583, %s573
        $region52: #{pest_classifier_forward.1} parent=39 // pred_fallthru
          _
      $region40: #{pest_classifier_forward.1} parent=5 // pred_fallthru
        _
      %p589 = scmp.le.s32.totalorder 2, %s14
      // Predicated region
      $region53: #{pest_classifier_forward.1} parent=5 // pred_check
        %p590 = pneg %p589
      $region54: #{pest_classifier_forward.1} parent=5 // pred_check_branch
        %592 = sbr.rel (%p590) target = $region56
      $region55: #{pest_classifier_forward.1} parent=5 // pred_region
        %s593 = ssub.s32 %s14, 2
        // Predicated region
        $region57: #{pest_classifier_forward.1} parent=55 // pred_check
          %p594 = pneg %p167
        $region58: #{pest_classifier_forward.1} parent=55 // pred_check_branch
          %596 = sbr.rel (%p594) target = $region60
        $region59: #{pest_classifier_forward.1} parent=55 // pred_region
          %s597 = sand.u32 %s152, 1
          %s598 = scalar_lea.sflag [#allocation4], %s597
          %s599 = sand.u32 %s152, 1
          %s600 = scalar_lea.vmem [#allocation3], %s599
          %601 = dma.done %s598, 16
        $region60: #{pest_classifier_forward.1} parent=55 // pred_fallthru
          _
      $region56: #{pest_classifier_forward.1} parent=5 // pred_fallthru
        _
    $region6: #{pest_classifier_forward.1} parent=1 // loop_footer
      %s18 = sadd.s32 1, %s14
    $region7: #{pest_classifier_forward.1} parent=1 // loop_footer_branch
      %13 = sbr.rel target = $region3
    $region8: #{pest_classifier_forward.1} parent=1 // loop_exit
      _
    %602 = vsyncpa [#allocation4], 1
    %s603 = scalar_lea.sflag [#allocation4], 1
    %604 = vsyncpa %s603, 1

</llo_original>
